<compile_context>
chip_gen: v7x
topology: tpu7x:2x2x1
jax: 0.10.0
libtpu: 0.0.40
codegen_flags: <defaults>
</compile_context>

<pallas_src>
import jax
import jax.numpy as jnp
from jax.experimental import pallas as pl
from jax.experimental.pallas import tpu as pltpu

_LANES = 128
_MAX_TILE_R = 1024  # 1024 x 128 f32 = 512 KiB per buffer


def _bernoulli_kernel(seed_ref, p_ref, o_ref):
    tile_r, lanes = p_ref.shape
    i = pl.program_id(0)

    # Global flat element index of every lane in this tile.
    row = jax.lax.broadcasted_iota(jnp.int32, (tile_r, lanes), 0)
    col = jax.lax.broadcasted_iota(jnp.int32, (tile_r, lanes), 1)
    idx = ((i * tile_r + row) * lanes + col).astype(jnp.uint32)

    # Counter-based PRNG: lowbias32-style integer hash of (seed, index).
    # Pure uint32 VPU ops -> lowers under Mosaic and in interpret mode
    # (unlike pltpu.prng_seed / prng_random_bits).
    seed = seed_ref[0].astype(jnp.uint32)
    x = idx + seed * jnp.uint32(0x9E3779B9)
    x = (x ^ (x >> jnp.uint32(16))) * jnp.uint32(0x7FEB352D)
    x = (x ^ (x >> jnp.uint32(15))) * jnp.uint32(0x846CA68B)
    x = x ^ (x >> jnp.uint32(16))

    # Bernoulli draw: top 24 random bits vs. p * 2^24, compared in int space
    # (avoids building a float uniform per element).
    bits24 = (x >> jnp.uint32(8)).astype(jnp.int32)              # in [0, 2^24)
    thresh = (p_ref[...] * jnp.float32(1 << 24)).astype(jnp.int32)
    sample = (bits24 < thresh).astype(jnp.float32)

    # Forward of `sample + probs - probs.detach()` == `sample` exactly.
    # TODO(synk): straight-through gradient path is autograd-only; not
    # represented in this forward-only kernel.
    o_ref[...] = sample


def _round_up(x: int, m: int) -> int:
    return ((x + m - 1) // m) * m


def bernoulli_sample_layer(probs: jax.Array, seed: int = 0) -> jax.Array:
    """Forward pass of BernoulliSampleLayer. probs: any shape, values in [0, 1]."""
    orig_shape = probs.shape
    orig_dtype = probs.dtype

    total = probs.size
    rows = -(-total // _LANES)  # cdiv

    # Tile sizing: one right-sized tile for small inputs, 512 KiB tiles
    # (double-buffered by Pallas) for large ones.
    if rows <= _MAX_TILE_R:
        tile_r = _round_up(max(rows, 1), 8)
    else:
        tile_r = _MAX_TILE_R
    padded_rows = _round_up(rows, tile_r)
    grid = (padded_rows // tile_r,)

    flat = jnp.ravel(probs).astype(jnp.float32)
    pad = padded_rows * _LANES - total
    if pad:
        flat = jnp.pad(flat, (0, pad))  # padded probs are 0 -> sample 0, sliced off
    flat = flat.reshape(padded_rows, _LANES)

    seed_arr = jnp.asarray([seed], dtype=jnp.int32)

    # Grid steps are independent -> shard across TensorCores on megacore chips.
    # (Only pass TPU compiler params when actually lowering for TPU.)
    compiler_params = None
    if jax.default_backend() == "tpu":
        compiler_params = pltpu.CompilerParams(dimension_semantics=("parallel",))

    out = pl.pallas_call(
        _bernoulli_kernel,
        out_shape=jax.ShapeDtypeStruct((padded_rows, _LANES), jnp.float32),
        grid=grid,
        in_specs=[
            pl.BlockSpec(memory_space=pltpu.MemorySpace.SMEM),   # scalar seed
            pl.BlockSpec((tile_r, _LANES), lambda i: (i, 0)),    # probs tile
        ],
        out_specs=pl.BlockSpec((tile_r, _LANES), lambda i: (i, 0)),
        compiler_params=compiler_params,
    )(seed_arr, flat)

    out_flat = out.reshape(-1)[:total]
    return out_flat.reshape(orig_shape).astype(orig_dtype)


if __name__ == "__main__":
    key = jax.random.PRNGKey(0)
    # Small NCHW input consistent with an elementwise layer: (2, 4, 16, 16)
    probs = jax.random.uniform(key, (2, 4, 16, 16), dtype=jnp.float32)

    out = jax.block_until_ready(bernoulli_sample_layer(probs, seed=0))

    # Shape / dtype / binary-valued output.
    assert out.shape == probs.shape
    assert out.dtype == probs.dtype
    assert bool(jnp.all((out == 0.0) | (out == 1.0))), "Bernoulli sample must be 0/1"

    # Deterministic endpoints: p=0 -> all zeros, p=1 -> all ones.
    zeros = jax.block_until_ready(bernoulli_sample_layer(jnp.zeros_like(probs), seed=1))
    ones = jax.block_until_ready(bernoulli_sample_layer(jnp.ones_like(probs), seed=2))
    assert bool(jnp.all(zeros == 0.0))
    assert bool(jnp.all(ones == 1.0))

    # Sample mean should track E[p] (2048 elems -> std of mean ~0.009; 0.05 is >5 sigma).
    assert abs(float(out.mean()) - float(probs.mean())) < 0.05

    print("KERNEL_OK")
</pallas_src>

<mosaic_0001>
module attributes {stable_mosaic.version = 11 : i64} {
  func.func @_bernoulli_kernel(%arg0: i32, %arg1: memref<1xi32, #tpu.memory_space<smem>>, %arg2: memref<16x128xf32, #tpu.memory_space<vmem>>, %arg3: memref<16x128xf32, #tpu.memory_space<vmem>>) attributes {dimension_semantics = [#tpu.dimension_semantics<arbitrary>], iteration_bounds = array<i64: 1>, scalar_prefetch = 0 : i64, scratch_operands = 0 : i64, tpu.core_type = #tpu.core_type<tc>, window_params = [{transform_indices = @transform_0, window_bounds = array<i64: 1>}, {transform_indices = @transform_1, window_bounds = array<i64: 16, 128>}, {transform_indices = @transform_2, window_bounds = array<i64: 16, 128>}]} {
    %0 = tpu.iota {dimensions = array<i32: 0>} : vector<16x128xi32>
    %1 = tpu.iota {dimensions = array<i32: 1>} : vector<16x128xi32>
    %c16_i32 = arith.constant 16 : i32
    %2 = arith.muli %arg0, %c16_i32 : i32
    %3 = vector.broadcast %2 : i32 to vector<16x128xi32>
    %4 = arith.addi %3, %0 : vector<16x128xi32>
    %c128_i32 = arith.constant 128 : i32
    %5 = vector.broadcast %c128_i32 : i32 to vector<16x128xi32>
    %6 = arith.muli %4, %5 : vector<16x128xi32>
    %7 = arith.addi %6, %1 : vector<16x128xi32>
    %c0 = arith.constant 0 : index
    %8 = memref.load %arg1[%c0] : memref<1xi32, #tpu.memory_space<smem>>
    %c-1640531527_i32 = arith.constant -1640531527 : i32
    %9 = arith.muli %8, %c-1640531527_i32 : i32
    %10 = vector.broadcast %9 : i32 to vector<16x128xi32>
    %11 = arith.addi %7, %10 : vector<16x128xi32>
    %c16_i32_0 = arith.constant 16 : i32
    %12 = vector.broadcast %c16_i32_0 : i32 to vector<16x128xi32>
    %13 = arith.shrui %11, %12 : vector<16x128xi32>
    %14 = arith.xori %11, %13 : vector<16x128xi32>
    %c2146121005_i32 = arith.constant 2146121005 : i32
    %15 = vector.broadcast %c2146121005_i32 : i32 to vector<16x128xi32>
    %16 = arith.muli %14, %15 : vector<16x128xi32>
    %c15_i32 = arith.constant 15 : i32
    %17 = vector.broadcast %c15_i32 : i32 to vector<16x128xi32>
    %18 = arith.shrui %16, %17 : vector<16x128xi32>
    %19 = arith.xori %16, %18 : vector<16x128xi32>
    %c-2073254261_i32 = arith.constant -2073254261 : i32
    %20 = vector.broadcast %c-2073254261_i32 : i32 to vector<16x128xi32>
    %21 = arith.muli %19, %20 : vector<16x128xi32>
    %c16_i32_1 = arith.constant 16 : i32
    %22 = vector.broadcast %c16_i32_1 : i32 to vector<16x128xi32>
    %23 = arith.shrui %21, %22 : vector<16x128xi32>
    %24 = arith.xori %21, %23 : vector<16x128xi32>
    %c8_i32 = arith.constant 8 : i32
    %25 = vector.broadcast %c8_i32 : i32 to vector<16x128xi32>
    %26 = arith.shrui %24, %25 : vector<16x128xi32>
    %c0_2 = arith.constant 0 : index
    %c0_3 = arith.constant 0 : index
    %27 = vector.load %arg2[%c0_2, %c0_3] : memref<16x128xf32, #tpu.memory_space<vmem>>, vector<16x128xf32>
    %cst = arith.constant 0x4B800000 : f32
    %28 = vector.broadcast %cst : f32 to vector<16x128xf32>
    %29 = arith.mulf %27, %28 : vector<16x128xf32>
    %30 = arith.fptosi %29 : vector<16x128xf32> to vector<16x128xi32>
    %31 = arith.cmpi slt, %26, %30 : vector<16x128xi32>
    %32 = arith.extui %31 : vector<16x128xi1> to vector<16x128xi32>
    %33 = arith.sitofp %32 : vector<16x128xi32> to vector<16x128xf32>
    %c0_4 = arith.constant 0 : index
    %c0_5 = arith.constant 0 : index
    %34 = vector.load %arg3[%c0_4, %c0_5] : memref<16x128xf32, #tpu.memory_space<vmem>>, vector<16x128xf32>
    tpu.vector_store %arg3[%c0_4, %c0_5], %33 {strides = array<i32>} : memref<16x128xf32, #tpu.memory_space<vmem>>, vector<16x128xf32>,
    return
  }
  func.func @transform_0(%arg0: i32) -> i32 {
    %c0_i32 = arith.constant 0 : i32
    %c0_i32_0 = arith.constant 0 : i32
    return %c0_i32 : i32
  }
  func.func @transform_1(%arg0: i32) -> (i32, i32) {
    %c0_i32 = arith.constant 0 : i32
    %c0_i32_0 = arith.constant 0 : i32
    return %arg0, %c0_i32 : i32, i32
  }
  func.func @transform_2(%arg0: i32) -> (i32, i32) {
    %c0_i32 = arith.constant 0 : i32
    %c0_i32_0 = arith.constant 0 : i32
    return %arg0, %c0_i32 : i32, i32
  }
}

</mosaic_0001>

<llo_original>
// kernel: tpu_custom_call.1
$region0: #{tpu_custom_call.1}
  #allocation0 [shape = 'u32[]', space=smem, size = 0x4, offset = 0x4, fixed_abs, tag = 'smem constant byte address 0x4 - core index']
  #allocation1 [shape = 'u32[144,128]{1,0:T(1,128)}', space=vmem, size = 0x12000, scoped, tag = 'internal scratch']
  #allocation2 [shape = 's32[1]{0:T(128)S(6)}', space=smem, size = 0x200, scoped, tag = 'scoped memory for tpu_custom_call.1']
  %s0 = inlined_call_operand.<no memory space> [shape: s32[1], index: 0, kind: input, shape index: {}]
  %s1 = inlined_call_operand.hbm [shape: f32[16,128], index: 1, kind: input, shape index: {}]
  %s2 = inlined_call_operand.hbm [shape: f32[16,128], index: 2, kind: output, shape index: {}]
  %s3 = sld [smem:[#allocation0]]
  $region22: #{tpu_custom_call.1} parent=0
    _
  %s5 = ssub.s32 1, %s3
  %s6 = scalar_select 0, %s5, %s3
  %7 = sst [smem:[#allocation2]] %s0
  $region1: #{tpu_custom_call.1} parent=0
    #allocation3 [shape = 'u8[8192]{0}', space=vmem, size = 0x2000, scoped, tag = 'input window, operand 1, single buffered']
    #allocation4 [shape = 's32[1]{0}', space=sflag, size = 0x4, scoped, tag = 'scoped memory for tpu_custom_call.1']
    #allocation5 [shape = 's32[1]{0}', space=sflag, size = 0x4, scoped, tag = 'scoped memory for tpu_custom_call.1']
    #allocation6 [shape = 'u8[8192]{0}', space=vmem, size = 0x2000, scoped, tag = 'output window, operand 0, single buffered']
    %8 = vsyncpa [#allocation4], 0
    %9 = vsyncpa [#allocation5], 0
    // Predicated region
    $region2: #{tpu_custom_call.1} parent=1 // pred_check
      _
    $region3: #{tpu_custom_call.1} parent=1 // pred_check_branch
      %11 = sbr.rel (0) target = $region5
    $region4: #{tpu_custom_call.1} parent=1 // pred_region
      _
    $region5: #{tpu_custom_call.1} parent=1 // pred_fallthru
      _
    // Predicated region
    $region6: #{tpu_custom_call.1} parent=1 // pred_check
      _
    $region7: #{tpu_custom_call.1} parent=1 // pred_check_branch
      %13 = sbr.rel (0) target = $region9
    $region8: #{tpu_custom_call.1} parent=1 // pred_region
      %s15 = ssub.s32 256, 256
      %16 = vsyncadd [#allocation4], %s15
      %s17 = sshll.u32 [#allocation3], 4
      %s18 = int_to_ptr.vmem [resolvable:$true] %s17
      %23 = dma.hbm_to_vmem [thread:$0]  %s1, 256, %s18, [#allocation4], 128, 128, 8
    $region9: #{tpu_custom_call.1} parent=1 // pred_fallthru
      _
    // Predicated region
    $region10: #{tpu_custom_call.1} parent=1 // pred_check
      _
    $region11: #{tpu_custom_call.1} parent=1 // pred_check_branch
      %25 = sbr.rel (0) target = $region13
    $region12: #{tpu_custom_call.1} parent=1 // pred_region
      %26 = dma.done [#allocation4], 256
    $region13: #{tpu_custom_call.1} parent=1 // pred_fallthru
      _
    %v27 = vlaneseq
    %v28 = vshrl.u32 %v27, 7
    %v29 = vadd.s32 %v28, 8
    %v30 = vlaneseq
    %v31 = vand.u32 %v30, 127
    %s32 = smul.u32 0, 16
    %v33 = vstv %s32
    %v34 = vadd.s32 %v33, %v28
    %v35 = vadd.s32 %v33, %v29
    %v36 = vmul.u32 %v34, 128
    %v37 = vmul.u32 %v35, 128
    %v38 = vadd.s32 %v36, %v31
    %v39 = vadd.s32 %v37, %v31
    %s40 = sld [smem:[#allocation2]]
    %s41 = smul.u32 %s40, 2654435769
    %v42 = vstv %s41
    %v43 = vadd.s32 %v38, %v42
    %v44 = vadd.s32 %v39, %v42
    %v45 = vshrl.u32 %v43, 16
    %v46 = vshrl.u32 %v44, 16
    %v47 = vxor.u32 %v43, %v45
    %v48 = vxor.u32 %v44, %v46
    %v49 = vmul.u32 %v47, 2146121005
    %v50 = vmul.u32 %v48, 2146121005
    %v51 = vshrl.u32 %v49, 15
    %v52 = vshrl.u32 %v50, 15
    %v53 = vxor.u32 %v49, %v51
    %v54 = vxor.u32 %v50, %v52
    %v55 = vmul.u32 %v53, 2221713035
    %v56 = vmul.u32 %v54, 2221713035
    %v57 = vshrl.u32 %v55, 16
    %v58 = vshrl.u32 %v56, 16
    %v59 = vxor.u32 %v55, %v57
    %v60 = vxor.u32 %v56, %v58
    %v61 = vshrl.u32 %v59, 8
    %v62 = vshrl.u32 %v60, 8
    %v63 = vld [vmem:[#allocation3] sm:$0xff]
    %v64 = vld [vmem:[#allocation3 + $0x8] sm:$0xff]
    %v65 = vmul.f32 %v63, 16777216.0
    %v66 = vmul.f32 %v64, 16777216.0
    %v67 = vcvt.f32.s32.to.zero.pseudo %v65
    %v68 = vcvt.f32.s32.to.zero.pseudo %v66
    %vm69 = vcmp.lt.s32.totalorder %v61, %v67
    %vm70 = vcmp.lt.s32.totalorder %v62, %v68
    %v71 = vsel %vm69, 1, 0
    %v72 = vsel %vm70, 1, 0
    %v73 = vcvt.s32.f32 %v71
    %v74 = vcvt.s32.f32 %v72
    %75 = vst [vmem:[#allocation6] sm:$0xff] %v73
    %76 = vst [vmem:[#allocation6 + $0x8] sm:$0xff] %v74
    // Predicated region
    $region14: #{tpu_custom_call.1} parent=1 // pred_check
      _
    $region15: #{tpu_custom_call.1} parent=1 // pred_check_branch
      %78 = sbr.rel (0) target = $region17
    $region16: #{tpu_custom_call.1} parent=1 // pred_region
      %s80 = ssub.s32 256, 256
      %81 = vsyncadd [#allocation5], %s80
      %s82 = sshll.u32 [#allocation6], 4
      %s83 = int_to_ptr.vmem [resolvable:$true] %s82
      %88 = dma.vmem_to_hbm [thread:$0]  %s83, 256, %s2, [#allocation5], 128, 128, 8
    $region17: #{tpu_custom_call.1} parent=1 // pred_fallthru
      _
    // Predicated region
    $region18: #{tpu_custom_call.1} parent=1 // pred_check
      _
    $region19: #{tpu_custom_call.1} parent=1 // pred_check_branch
      %90 = sbr.rel (0) target = $region21
    $region20: #{tpu_custom_call.1} parent=1 // pred_region
      %91 = dma.done [#allocation5], 256
    $region21: #{tpu_custom_call.1} parent=1 // pred_fallthru
      _
    %92 = vsyncpa [#allocation4], 1
    %93 = vsyncpa [#allocation5], 1

</llo_original>
